<compile_context>
chip_gen: v5e
topology: v5e:2x2
jax: 0.10.0
libtpu: 0.0.40
codegen_flags: <defaults>
</compile_context>

<pallas_src>
import jax
import jax.numpy as jnp
from jax.experimental import pallas as pl
from jax.experimental.pallas import tpu as pltpu


def masked_residual_kernel(x_ref, w0_ref, w1_ref, b_ref, o_ref):
    x = x_ref[...]                                     # (tile_r, Fp) f32, lane-dense packed rows
    b = b_ref[...]                                     # (1, Fp) f32
    t = jnp.maximum(x, 0.0)                            # activation (relu)
    # bf16 operands, f32 accumulation on the MXU.
    t = jnp.dot(t.astype(jnp.bfloat16), w0_ref[...],
                preferred_element_type=jnp.float32) + b
    t = jnp.maximum(t, 0.0)                            # activation (relu)
    # dropout_probability = 0.0  -> identity
    t = jnp.dot(t.astype(jnp.bfloat16), w1_ref[...],
                preferred_element_type=jnp.float32) + b
    o_ref[...] = x + t                                 # residual connection


def make_made_masks(features, autoregressive_features):
    """Builds the two hidden-layer MADE masks of MaskedResidualBlock.

    in_degrees is chosen as standard MADE hidden-layer degrees
    (arange(features) % (D-1) + 1), which satisfies the block's
    `degrees >= in_degrees` check.
    """
    D = autoregressive_features
    max_ = max(1, D - 1)
    min_ = min(1, D - 1)
    in_deg = jnp.arange(features) % max_ + min_        # block input degrees
    deg0 = jnp.arange(features) % max_ + min_          # linear_0 out degrees
    deg1 = jnp.arange(features) % max_ + min_          # linear_1 out degrees
    # stored as (out, in); forward reinterprets the square buffer as (in, out)
    mask0 = (deg0[:, None] >= in_deg[None, :]).astype(jnp.float32)
    mask1 = (deg1[:, None] >= deg0[None, :]).astype(jnp.float32)
    return mask0, mask1


def _mxu_lane_width():
    """256 on the 256x256-MXU generations (v6e/v7x), 128 on v5e."""
    try:
        kind = jax.devices()[0].device_kind.lower()
    except Exception:
        return 256
    if "v5 lite" in kind or "v5lite" in kind or "v5e" in kind:
        return 128
    return 256


def prepare_packed_params(params, mask0, mask1, features, pack):
    """Splits the conditioner output exactly like MaskedLinear.forward, folds the
    MADE masks into the weights ONCE, and packs to block-diagonal lane-dense bf16
    weights.  Cache / reuse the result across calls: this is per-layer work, not
    per-row work."""
    F = features
    size_w = F * F
    weight = params[..., :size_w].reshape(F, F)               # (in j, out k)
    bias = params[..., size_w:size_w + F].reshape(1, F)
    mw0 = weight * mask0
    mw1 = weight * mask1
    if pack > 1:
        eye = jnp.eye(pack, dtype=mw0.dtype)
        w0 = jnp.kron(eye, mw0)                               # (pack*F, pack*F) block-diag
        w1 = jnp.kron(eye, mw1)
        b = jnp.tile(bias, (1, pack))                         # (1, pack*F)
    else:
        w0, w1, b = mw0, mw1, bias
    return w0.astype(jnp.bfloat16), w1.astype(jnp.bfloat16), b.astype(jnp.float32)


def masked_residual_block(inputs, params, mask0, mask1, *,
                          lane_width=None, tile_rows=None):
    """inputs: (1, 1, N, F) f32, params: (1, 1, P) with P >= F*F + F."""
    A, B, N, F = inputs.shape
    assert A == 1 and B == 1, "kernel specialised to unit leading batch dims"
    rows = A * B * N

    # Lane packing factor: fold `pack` consecutive rows into one lane-dense row of
    # width pack*F via block-diagonal weights, sized to the MXU width of this chip.
    if lane_width is None:
        lane_width = _mxu_lane_width()
    pack = lane_width // F if (F < lane_width and lane_width % F == 0) else 1
    while pack > 1 and rows % pack != 0:
        pack //= 2
    Fp = pack * F

    w0, w1, b = prepare_packed_params(params, mask0, mask1, F, pack)

    packed_rows = rows // pack
    xp = inputs.reshape(packed_rows, Fp)                      # lane-dense view

    # Tile sizing: >= 4 grid steps (>= 2 per TensorCore) but cap block at ~2 MiB f32
    # so VMEM (double-buffered in/out + bf16 weights) stays small on every generation.
    max_tile_r = max(8, (2 * 1024 * 1024) // (Fp * 4))
    if tile_rows is None:
        tile_r = min(max_tile_r, pl.cdiv(packed_rows, 4))
    else:
        tile_r = min(max_tile_r, pl.cdiv(tile_rows, pack))
    tile_r = max(8, (tile_r // 8) * 8)                        # multiple of 8 sublanes
    grid = (pl.cdiv(packed_rows, tile_r),)                    # trailing block is clipped

    outp = pl.pallas_call(
        masked_residual_kernel,
        out_shape=jax.ShapeDtypeStruct((packed_rows, Fp), jnp.float32),
        grid=grid,
        in_specs=[
            pl.BlockSpec((tile_r, Fp), lambda i: (i, 0)),     # packed activation rows
            pl.BlockSpec((Fp, Fp), lambda i: (0, 0)),         # pre-masked bf16 weight, layer 0
            pl.BlockSpec((Fp, Fp), lambda i: (0, 0)),         # pre-masked bf16 weight, layer 1
            pl.BlockSpec((1, Fp), lambda i: (0, 0)),          # bias (tiled to packed width)
        ],
        out_specs=pl.BlockSpec((tile_r, Fp), lambda i: (i, 0)),
        compiler_params=pltpu.CompilerParams(
            dimension_semantics=("parallel",)),
    )(xp, w0, w1, b)

    return outp.reshape(A, B, N, F)


def _reference(inputs, params, mask0, mask1):
    """Pure-JAX f32 reference mirroring the PyTorch forward with default flags."""
    F = inputs.shape[-1]
    W = params[..., :F * F].reshape(1, 1, F, F)
    b = params[..., F * F:F * F + F]
    t = jnp.maximum(inputs, 0.0)
    t = jnp.einsum('abij,abjk->abik', t, W * mask0) + b
    t = jnp.maximum(t, 0.0)
    t = jnp.einsum('abij,abjk->abik', t, W * mask1) + b
    return inputs + t


if __name__ == "__main__":
    F = 32          # features = len(in_degrees)  (hidden width)
    D = 4           # autoregressive_features
    N = 2048        # rows ("i" axis of the einsum)
    P = F * F + F + 16   # conditioner output: weight + bias + leftover chunk

    key = jax.random.PRNGKey(0)
    k1, k2, k3 = jax.random.split(key, 3)
    x = jax.random.normal(k1, (1, 1, N, F), dtype=jnp.float32)
    params = 0.1 * jax.random.normal(k2, (1, 1, P), dtype=jnp.float32)
    mask0, mask1 = make_made_masks(F, D)

    out = masked_residual_block(x, params, mask0, mask1)
    out = jax.block_until_ready(out)
    ref = _reference(x, params, mask0, mask1)
    assert out.shape == x.shape
    # bf16 matmul operands (f32 accumulate) -> tolerance looser than pure f32.
    assert jnp.allclose(out, ref, atol=2e-2, rtol=2e-2), "mismatch vs reference"

    # Second, tile-unaligned row count: exercises the clipped trailing block
    # (no pad/concatenate copy in the wrapper).
    N2 = 1000
    x2 = jax.random.normal(k3, (1, 1, N2, F), dtype=jnp.float32)
    out2 = jax.block_until_ready(masked_residual_block(x2, params, mask0, mask1))
    ref2 = _reference(x2, params, mask0, mask1)
    assert out2.shape == x2.shape
    assert jnp.allclose(out2, ref2, atol=2e-2, rtol=2e-2), "mismatch vs reference (unaligned N)"

    print("KERNEL_OK")

    # TODO(synk): use_batch_norm / dropout>0 / context GLU branches are disabled
    # in the default module config and are not implemented in the kernel.
</pallas_src>

<mosaic_0001>
module attributes {stable_mosaic.version = 11 : i64} {
  func.func @masked_residual_kernel(%arg0: i32, %arg1: memref<64x256xf32, #tpu.memory_space<vmem>>, %arg2: memref<256x256xbf16, #tpu.memory_space<vmem>>, %arg3: memref<256x256xbf16, #tpu.memory_space<vmem>>, %arg4: memref<1x256xf32, #tpu.memory_space<vmem>>, %arg5: memref<64x256xf32, #tpu.memory_space<vmem>>) attributes {dimension_semantics = [#tpu.dimension_semantics<parallel>], iteration_bounds = array<i64: 4>, scalar_prefetch = 0 : i64, scratch_operands = 0 : i64, tpu.core_type = #tpu.core_type<tc>, window_params = [{transform_indices = @transform_0, window_bounds = array<i64: 64, 256>}, {pipeline_mode = #tpu.pipeline_mode<synchronous>, transform_indices = @transform_1, window_bounds = array<i64: 256, 256>}, {pipeline_mode = #tpu.pipeline_mode<synchronous>, transform_indices = @transform_2, window_bounds = array<i64: 256, 256>}, {pipeline_mode = #tpu.pipeline_mode<synchronous>, transform_indices = @transform_3, window_bounds = array<i64: 1, 256>}, {transform_indices = @transform_4, window_bounds = array<i64: 64, 256>}]} {
    %c0 = arith.constant 0 : index
    %c0_0 = arith.constant 0 : index
    %0 = vector.load %arg1[%c0, %c0_0] : memref<64x256xf32, #tpu.memory_space<vmem>>, vector<64x256xf32>
    %c0_1 = arith.constant 0 : index
    %c0_2 = arith.constant 0 : index
    %1 = vector.load %arg4[%c0_1, %c0_2] : memref<1x256xf32, #tpu.memory_space<vmem>>, vector<1x256xf32>
    %cst = arith.constant 0.000000e+00 : f32
    %2 = vector.broadcast %cst : f32 to vector<64x256xf32>
    %3 = arith.maximumf %0, %2 : vector<64x256xf32>
    %4 = arith.truncf %3 : vector<64x256xf32> to vector<64x256xbf16>
    %c0_3 = arith.constant 0 : index
    %c0_4 = arith.constant 0 : index
    %5 = vector.load %arg2[%c0_3, %c0_4] : memref<256x256xbf16, #tpu.memory_space<vmem>>, vector<256x256xbf16>
    %cst_5 = arith.constant dense<0.000000e+00> : vector<64x256xf32>
    %6 = tpu.matmul %4, %5, %cst_5 {dimension_numbers = #tpu.dot_dimension_numbers<[1], [0], [0], [1], [0, 0, 1, 1], [], []>} : vector<64x256xbf16>, vector<256x256xbf16>, vector<64x256xf32> -> vector<64x256xf32>
    %7 = vector.broadcast %1 : vector<1x256xf32> to vector<64x256xf32>
    %8 = arith.addf %6, %7 : vector<64x256xf32>
    %cst_6 = arith.constant 0.000000e+00 : f32
    %9 = vector.broadcast %cst_6 : f32 to vector<64x256xf32>
    %10 = arith.maximumf %8, %9 : vector<64x256xf32>
    %11 = arith.truncf %10 : vector<64x256xf32> to vector<64x256xbf16>
    %c0_7 = arith.constant 0 : index
    %c0_8 = arith.constant 0 : index
    %12 = vector.load %arg3[%c0_7, %c0_8] : memref<256x256xbf16, #tpu.memory_space<vmem>>, vector<256x256xbf16>
    %cst_9 = arith.constant dense<0.000000e+00> : vector<64x256xf32>
    %13 = tpu.matmul %11, %12, %cst_9 {dimension_numbers = #tpu.dot_dimension_numbers<[1], [0], [0], [1], [0, 0, 1, 1], [], []>} : vector<64x256xbf16>, vector<256x256xbf16>, vector<64x256xf32> -> vector<64x256xf32>
    %14 = vector.broadcast %1 : vector<1x256xf32> to vector<64x256xf32>
    %15 = arith.addf %13, %14 : vector<64x256xf32>
    %16 = arith.addf %0, %15 : vector<64x256xf32>
    %c0_10 = arith.constant 0 : index
    %c0_11 = arith.constant 0 : index
    %17 = vector.load %arg5[%c0_10, %c0_11] : memref<64x256xf32, #tpu.memory_space<vmem>>, vector<64x256xf32>
    tpu.vector_store %arg5[%c0_10, %c0_11], %16 {strides = array<i32>} : memref<64x256xf32, #tpu.memory_space<vmem>>, vector<64x256xf32>,
    return
  }
  func.func @transform_0(%arg0: i32) -> (i32, i32) {
    %c0_i32 = arith.constant 0 : i32
    %c0_i32_0 = arith.constant 0 : i32
    return %arg0, %c0_i32 : i32, i32
  }
  func.func @transform_1(%arg0: i32) -> (i32, i32) {
    %c0_i32 = arith.constant 0 : i32
    %c0_i32_0 = arith.constant 0 : i32
    %c0_i32_1 = arith.constant 0 : i32
    return %c0_i32, %c0_i32_0 : i32, i32
  }
  func.func @transform_2(%arg0: i32) -> (i32, i32) {
    %c0_i32 = arith.constant 0 : i32
    %c0_i32_0 = arith.constant 0 : i32
    %c0_i32_1 = arith.constant 0 : i32
    return %c0_i32, %c0_i32_0 : i32, i32
  }
  func.func @transform_3(%arg0: i32) -> (i32, i32) {
    %c0_i32 = arith.constant 0 : i32
    %c0_i32_0 = arith.constant 0 : i32
    %c0_i32_1 = arith.constant 0 : i32
    return %c0_i32, %c0_i32_0 : i32, i32
  }
  func.func @transform_4(%arg0: i32) -> (i32, i32) {
    %c0_i32 = arith.constant 0 : i32
    %c0_i32_0 = arith.constant 0 : i32
    return %arg0, %c0_i32 : i32, i32
  }
}

</mosaic_0001>

<llo_original>
// kernel: tpu_custom_call.1
$region0: #{tpu_custom_call.1}
  #allocation0 [shape = 'u32[]', space=smem, size = 0x4, offset = 0x4, fixed_abs, tag = 'smem constant byte address 0x4 - core index']
  #allocation1 [shape = 'u32[72,128]{1,0:T(1,128)}', space=vmem, size = 0x9000, scoped, tag = 'internal scratch']
  %s0 = inlined_call_operand.hbm [shape: f32[256,256], index: 0, kind: input, shape index: {}]
  %s1 = inlined_call_operand.hbm [shape: bf16[256,256], index: 1, kind: input, shape index: {}]
  %s2 = inlined_call_operand.hbm [shape: bf16[256,256], index: 2, kind: input, shape index: {}]
  %s3 = inlined_call_operand.vmem [shape: f32[1,256], index: 3, kind: input, shape index: {}]
  %s4 = inlined_call_operand.hbm [shape: f32[256,256], index: 4, kind: output, shape index: {}]
  %s5 = sld [smem:[#allocation0]]
  $region61: #{tpu_custom_call.1} parent=0
    _
  %s7 = ssub.s32 1, %s5
  %s8 = scalar_select 0, %s7, %s5
  $region1: #{tpu_custom_call.1} parent=0
    #allocation2 [shape = 'u8[131072]{0}', space=vmem, size = 0x20000, scoped, tag = 'input window, operand 0']
    #allocation3 [shape = 's32[2]{0}', space=sflag, size = 0x8, scoped, tag = 'scoped memory for tpu_custom_call.1']
    #allocation4 [shape = 's32[2]{0}', space=sflag, size = 0x8, scoped, tag = 'scoped memory for tpu_custom_call.1']
    #allocation5 [shape = 'u8[131072]{0}', space=vmem, size = 0x20000, scoped, tag = 'input window, operand 1, single buffered']
    #allocation6 [shape = 's32[1]{0}', space=sflag, size = 0x4, scoped, tag = 'scoped memory for tpu_custom_call.1']
    #allocation7 [shape = 'u8[131072]{0}', space=vmem, size = 0x20000, scoped, tag = 'input window, operand 2, single buffered']
    #allocation8 [shape = 'u8[131072]{0}', space=vmem, size = 0x20000, scoped, tag = 'output window, operand 0']
    %9 = vsyncpa [#allocation3], 0
    %s10 = scalar_lea.sflag [#allocation3], 1
    %11 = vsyncpa %s10, 0
    %12 = vsyncpa [#allocation6], 0
    %13 = vsyncpa [#allocation4], 0
    %s14 = scalar_lea.sflag [#allocation4], 1
    %15 = vsyncpa %s14, 0
    loop: start=0, step=1, limit=6
    $region2: #{tpu_custom_call.1} parent=1 // loop_pre_header
      _
    $region3: #{tpu_custom_call.1} parent=1 // loop_header
      %s17 = sphi 0, %s21
      %p18 = scmp.ge.s32.totalorder %s17, 6
      %s27 = sphi 0, %s29
      %s30 = sphi 0, %s27
      %s31 = sphi 0, %s30
      %s47 = sphi 0, %s31
      %s51 = sphi 0, %s51
      %s53 = sphi 0, %s51
      %s54 = sphi 0, %s53
      %s68 = sphi 0, %s54
      %s72 = sphi 0, %s72
      %s74 = sphi 0, %s72
      %s75 = sphi 0, %s74
      %s89 = sphi 0, %s75
      %s93 = sphi 0, %s93
      %s95 = sphi 0, %s93
      %s96 = sphi 0, %s95
      %s110 = sphi 0, %s96
      %s116 = sphi 0, %s118
      %s119 = sphi 0, %s116
      %s120 = sphi 0, %s119
      %s136 = sphi 0, %s120
    $region4: #{tpu_custom_call.1} parent=1 // loop_header_branch
      %20 = sbr.rel (%p18) target = $region8
    $region5: #{tpu_custom_call.1} parent=1 // loop_body
      %s22 = ssub.s32 %s17, 1
      %s23 = ssub.s32 %s17, 2
      %s24 = sadd.s32 %s17, 1
      %s25 = ssub.s32 %s17, %s24
      %p26 = scmp.eq.s32.totalorder %s25, 0
      %s28 = sadd.s32 %s27, 1
      %s29 = scalar_select %p26, %s27, %s28
      %p32 = pneg %p26
      %p33 = scmp.eq.s32.totalorder %s17, 3
      %p34 = por %p32, %p33
      %p35 = scmp.ne.s32.totalorder %s27, %s30
      %p36 = scmp.eq.s32.totalorder %s17, 0
      %p37 = por %p35, %p36
      %p38 = scmp.ne.s32.totalorder %s27, %s30
      %p39 = scmp.eq.s32.totalorder %s22, 3
      %p40 = por %p38, %p39
      %p41 = scmp.ne.s32.totalorder %s30, %s31
      %p42 = scmp.eq.s32.totalorder %s22, 0
      %p43 = por %p41, %p42
      %p44 = scmp.ne.s32.totalorder %s30, %s31
      %p45 = scmp.eq.s32.totalorder %s23, 3
      %p46 = por %p44, %p45
      %p48 = scmp.ne.s32.totalorder %s31, %s47
      %p49 = scmp.eq.s32.totalorder %s23, 0
      %p50 = por %p48, %p49
      %s52 = sadd.s32 %s51, 1
      %p55 = scmp.eq.s32.totalorder %s17, 3
      %p56 = scmp.ne.s32.totalorder %s51, %s53
      %p57 = scmp.eq.s32.totalorder %s17, 0
      %p58 = por %p56, %p57
      %p59 = scmp.ne.s32.totalorder %s51, %s53
      %p60 = scmp.eq.s32.totalorder %s22, 3
      %p61 = por %p59, %p60
      %p62 = scmp.ne.s32.totalorder %s53, %s54
      %p63 = scmp.eq.s32.totalorder %s22, 0
      %p64 = por %p62, %p63
      %p65 = scmp.ne.s32.totalorder %s53, %s54
      %p66 = scmp.eq.s32.totalorder %s23, 3
      %p67 = por %p65, %p66
      %p69 = scmp.ne.s32.totalorder %s54, %s68
      %p70 = scmp.eq.s32.totalorder %s23, 0
      %p71 = por %p69, %p70
      %s73 = sadd.s32 %s72, 1
      %p76 = scmp.eq.s32.totalorder %s17, 3
      %p77 = scmp.ne.s32.totalorder %s72, %s74
      %p78 = scmp.eq.s32.totalorder %s17, 0
      %p79 = por %p77, %p78
      %p80 = scmp.ne.s32.totalorder %s72, %s74
      %p81 = scmp.eq.s32.totalorder %s22, 3
      %p82 = por %p80, %p81
      %p83 = scmp.ne.s32.totalorder %s74, %s75
      %p84 = scmp.eq.s32.totalorder %s22, 0
      %p85 = por %p83, %p84
      %p86 = scmp.ne.s32.totalorder %s74, %s75
      %p87 = scmp.eq.s32.totalorder %s23, 3
      %p88 = por %p86, %p87
      %p90 = scmp.ne.s32.totalorder %s75, %s89
      %p91 = scmp.eq.s32.totalorder %s23, 0
      %p92 = por %p90, %p91
      %s94 = sadd.s32 %s93, 1
      %p97 = scmp.eq.s32.totalorder %s17, 3
      %p98 = scmp.ne.s32.totalorder %s93, %s95
      %p99 = scmp.eq.s32.totalorder %s17, 0
      %p100 = por %p98, %p99
      %p101 = scmp.ne.s32.totalorder %s93, %s95
      %p102 = scmp.eq.s32.totalorder %s22, 3
      %p103 = por %p101, %p102
      %p104 = scmp.ne.s32.totalorder %s95, %s96
      %p105 = scmp.eq.s32.totalorder %s22, 0
      %p106 = por %p104, %p105
      %p107 = scmp.ne.s32.totalorder %s95, %s96
      %p108 = scmp.eq.s32.totalorder %s23, 3
      %p109 = por %p107, %p108
      %p111 = scmp.ne.s32.totalorder %s96, %s110
      %p112 = scmp.eq.s32.totalorder %s23, 0
      %p113 = por %p111, %p112
      %s114 = ssub.s32 %s17, %s24
      %p115 = scmp.eq.s32.totalorder %s114, 0
      %s117 = sadd.s32 %s116, 1
      %s118 = scalar_select %p115, %s116, %s117
      %p121 = pneg %p115
      %p122 = scmp.eq.s32.totalorder %s17, 3
      %p123 = por %p121, %p122
      %p124 = scmp.ne.s32.totalorder %s116, %s119
      %p125 = scmp.eq.s32.totalorder %s17, 0
      %p126 = por %p124, %p125
      %p127 = scmp.ne.s32.totalorder %s116, %s119
      %p128 = scmp.eq.s32.totalorder %s22, 3
      %p129 = por %p127, %p128
      %p130 = scmp.ne.s32.totalorder %s119, %s120
      %p131 = scmp.eq.s32.totalorder %s22, 0
      %p132 = por %p130, %p131
      %p133 = scmp.ne.s32.totalorder %s119, %s120
      %p134 = scmp.eq.s32.totalorder %s23, 3
      %p135 = por %p133, %p134
      %p137 = scmp.ne.s32.totalorder %s120, %s136
      %p138 = scmp.eq.s32.totalorder %s23, 0
      %p139 = por %p137, %p138
      %p140 = scmp.le.s32.totalorder 1, %s17
      %p141 = scmp.lt.s32.totalorder %s17, 5
      %p142 = pnand %p140, %p141
      %p143 = pneg %p142
      // Predicated region
      $region9: #{tpu_custom_call.1} parent=5 // pred_check
        _
      $region10: #{tpu_custom_call.1} parent=5 // pred_check_branch
        %145 = sbr.rel (%p142) target = $region12
      $region11: #{tpu_custom_call.1} parent=5 // pred_region
        %s146 = ssub.s32 %s17, 1
        // Predicated region
        $region13: #{tpu_custom_call.1} parent=11 // pred_check
          %p147 = pneg %p64
        $region14: #{tpu_custom_call.1} parent=11 // pred_check_branch
          %149 = sbr.rel (%p147) target = $region16
        $region15: #{tpu_custom_call.1} parent=11 // pred_region
          %151 = vsyncadd [#allocation6], 0
          %s152 = sshll.u32 %s1, 4
          %s153 = int_to_ptr.hbm [resolvable:$true] %s152
          %s154 = sshll.u32 [#allocation5], 4
          %s155 = int_to_ptr.vmem [resolvable:$true] %s154
          %160 = dma.hbm_to_vmem [thread:$0]  %s153, 4096, %s155, [#allocation6], 128, 128, 8
        $region16: #{tpu_custom_call.1} parent=11 // pred_fallthru
          _
        // Predicated region
        $region17: #{tpu_custom_call.1} parent=11 // pred_check
          %p161 = pneg %p85
        $region18: #{tpu_custom_call.1} parent=11 // pred_check_branch
          %163 = sbr.rel (%p161) target = $region20
        $region19: #{tpu_custom_call.1} parent=11 // pred_region
          %165 = vsyncadd [#allocation6], 0
          %s166 = sshll.u32 %s2, 4
          %s167 = int_to_ptr.hbm [resolvable:$true] %s166
          %s168 = sshll.u32 [#allocation7], 4
          %s169 = int_to_ptr.vmem [resolvable:$true] %s168
          %174 = dma.hbm_to_vmem [thread:$0]  %s167, 4096, %s169, [#allocation6], 128, 128, 8
        $region20: #{tpu_custom_call.1} parent=11 // pred_fallthru
          _
        // Predicated region
        $region21: #{tpu_custom_call.1} parent=11 // pred_check
          %p175 = pneg %p106
        $region22: #{tpu_custom_call.1} parent=11 // pred_check_branch
          %177 = sbr.rel (%p175) target = $region24
        $region23: #{tpu_custom_call.1} parent=11 // pred_region
          _
        $region24: #{tpu_custom_call.1} parent=11 // pred_fallthru
          _
      $region12: #{tpu_custom_call.1} parent=5 // pred_fallthru
        _
      %p178 = scmp.lt.s32.totalorder %s17, 4
      // Predicated region
      $region25: #{tpu_custom_call.1} parent=5 // pred_check
        %p179 = pneg %p178
      $region26: #{tpu_custom_call.1} parent=5 // pred_check_branch
        %181 = sbr.rel (%p179) target = $region28
      $region27: #{tpu_custom_call.1} parent=5 // pred_region
        // Predicated region
        $region29: #{tpu_custom_call.1} parent=27 // pred_check
          %p182 = pneg %p37
        $region30: #{tpu_custom_call.1} parent=27 // pred_check_branch
          %184 = sbr.rel (%p182) target = $region32
        $region31: #{tpu_custom_call.1} parent=27 // pred_region
          %s185 = sand.u32 %s27, 1
          %s186 = scalar_lea.sflag [#allocation3], %s185
          %s187 = sand.u32 %s27, 1
          %s188 = smul.addr %s187, 128
          %s189 = scalar_lea.vmem [#allocation2], %s188
          %s190 = smul.u32 8, %s17
          %192 = vsyncadd %s186, 0
          %s193 = smul.addr %s190, 2
          %s194 = smul.addr %s193, 8
          %s195 = scalar_lea.hbm %s0, %s194
          %s196 = sshll.u32 %s195, 4
          %s197 = int_to_ptr.hbm [resolvable:$true] %s196
          %s198 = sshll.u32 %s189, 4
          %s199 = int_to_ptr.vmem [resolvable:$true] %s198
          %204 = dma.hbm_to_vmem [thread:$0]  %s197, 2048, %s199, %s186, 256, 256, 16
        $region32: #{tpu_custom_call.1} parent=27 // pred_fallthru
          _
      $region28: #{tpu_custom_call.1} parent=5 // pred_fallthru
        _
      %p205 = scmp.le.s32.totalorder 1, %s17
      %p206 = scmp.lt.s32.totalorder %s17, 5
      %p207 = pnand %p205, %p206
      %p208 = pneg %p207
      // Predicated region
      $region33: #{tpu_custom_call.1} parent=5 // pred_check
        _
      $region34: #{tpu_custom_call.1} parent=5 // pred_check_branch
        %210 = sbr.rel (%p207) target = $region36
      $region35: #{tpu_custom_call.1} parent=5 // pred_region
        %s211 = ssub.s32 %s17, 1
        %s212 = sand.u32 %s30, 1
        %s213 = scalar_lea.sflag [#allocation3], %s212
        %s214 = sand.u32 %s30, 1
        %s215 = smul.addr %s214, 128
        %s216 = scalar_lea.vmem [#allocation2], %s215
        // Predicated region
        $region37: #{tpu_custom_call.1} parent=35 // pred_check
          %p217 = pneg %p43
        $region38: #{tpu_custom_call.1} parent=35 // pred_check_branch
          %219 = sbr.rel (%p217) target = $region40
        $region39: #{tpu_custom_call.1} parent=35 // pred_region
          %221 = dma.done %s213, 2048
        $region40: #{tpu_custom_call.1} parent=35 // pred_fallthru
          _
        // Predicated region
        $region41: #{tpu_custom_call.1} parent=35 // pred_check
          %p222 = pneg %p64
        $region42: #{tpu_custom_call.1} parent=35 // pred_check_branch
          %224 = sbr.rel (%p222) target = $region44
        $region43: #{tpu_custom_call.1} parent=35 // pred_region
          %226 = dma.done [#allocation6], 4096
        $region44: #{tpu_custom_call.1} parent=35 // pred_fallthru
          _
        // Predicated region
        $region45: #{tpu_custom_call.1} parent=35 // pred_check
          %p227 = pneg %p85
        $region46: #{tpu_custom_call.1} parent=35 // pred_check_branch
          %229 = sbr.rel (%p227) target = $region48
        $region47: #{tpu_custom_call.1} parent=35 // pred_region
          %231 = dma.done [#allocation6], 4096
        $region48: #{tpu_custom_call.1} parent=35 // pred_fallthru
          _
        %s232 = sand.u32 %s30, 1
        %s233 = scalar_lea.sflag [#allocation3], %s232
        %s234 = sand.u32 %s30, 1
        %s235 = smul.addr %s234, 128
        %s236 = scalar_lea.vmem [#allocation2], %s235
        %p237 = pneg %p43
        %p238 = pneg %p40
        %p239 = pneg %p64
        %p240 = pneg %p61
        %p241 = pneg %p85
        %p242 = pneg %p82
        %p243 = pneg %p106
        %p244 = pneg %p103
        %p245 = pneg %p132
        %p246 = pneg %p129
        %s247 = sand.u32 %s119, 1
        %s248 = scalar_lea.sflag [#allocation4], %s247
        %s249 = sand.u32 %s119, 1
        %s250 = smul.addr %s249, 128
        %s251 = scalar_lea.vmem [#allocation8], %s250
        %s252 = smul.u32 8, %s22
        %s253 = smul.u32 8, %s22
        %v254 = vld [vmem:[%s216] sm:$0xff]
        %v255 = vld [vmem:[%s216 + $0x8] sm:$0xff]
        %v256 = vld [vmem:[%s216 + $0x10] sm:$0xff]
        %v257 = vld [vmem:[%s216 + $0x18] sm:$0xff]
        %v258 = vld [vmem:[%s216 + $0x20] sm:$0xff]
        %v259 = vld [vmem:[%s216 + $0x28] sm:$0xff]
        %v260 = vld [vmem:[%s216 + $0x30] sm:$0xff]
        %v261 = vld [vmem:[%s216 + $0x38] sm:$0xff]
        %v262 = vld [vmem:[%s216 + $0x40] sm:$0xff]
        %v263 = vld [vmem:[%s216 + $0x48] sm:$0xff]
        %v264 = vld [vmem:[%s216 + $0x50] sm:$0xff]
        %v265 = vld [vmem:[%s216 + $0x58] sm:$0xff]
        %v266 = vld [vmem:[%s216 + $0x60] sm:$0xff]
        %v267 = vld [vmem:[%s216 + $0x68] sm:$0xff]
        %v268 = vld [vmem:[%s216 + $0x70] sm:$0xff]
        %v269 = vld [vmem:[%s216 + $0x78] sm:$0xff]
        %v270 = vld [vmem:[%s3] sm:$0x3]
        %v271 = vmax.f32 %v254, 0.0
        %v272 = vmax.f32 %v255, 0.0
        %v273 = vmax.f32 %v256, 0.0
        %v274 = vmax.f32 %v257, 0.0
        %v275 = vmax.f32 %v258, 0.0
        %v276 = vmax.f32 %v259, 0.0
        %v277 = vmax.f32 %v260, 0.0
        %v278 = vmax.f32 %v261, 0.0
        %v279 = vmax.f32 %v262, 0.0
        %v280 = vmax.f32 %v263, 0.0
        %v281 = vmax.f32 %v264, 0.0
        %v282 = vmax.f32 %v265, 0.0
        %v283 = vmax.f32 %v266, 0.0
        %v284 = vmax.f32 %v267, 0.0
        %v285 = vmax.f32 %v268, 0.0
        %v286 = vmax.f32 %v269, 0.0
        %v287 = vpack.c.bf16 %v273, %v271
        %v288 = vpack.c.bf16 %v274, %v272
        %v289 = vpack.c.bf16 %v277, %v275
        %v290 = vpack.c.bf16 %v278, %v276
        %v291 = vpack.c.bf16 %v281, %v279
        %v292 = vpack.c.bf16 %v282, %v280
        %v293 = vpack.c.bf16 %v285, %v283
        %v294 = vpack.c.bf16 %v286, %v284
        %v295 = vld [vmem:[#allocation5] sm:$0xff]
        %v296 = vld [vmem:[#allocation5 + $0x8] sm:$0xff]
        %v297 = vld [vmem:[#allocation5 + $0x10] sm:$0xff]
        %v298 = vld [vmem:[#allocation5 + $0x18] sm:$0xff]
        %v299 = vld [vmem:[#allocation5 + $0x20] sm:$0xff]
        %v300 = vld [vmem:[#allocation5 + $0x28] sm:$0xff]
        %v301 = vld [vmem:[#allocation5 + $0x30] sm:$0xff]
        %v302 = vld [vmem:[#allocation5 + $0x38] sm:$0xff]
        %v303 = vld [vmem:[#allocation5 + $0x40] sm:$0xff]
        %v304 = vld [vmem:[#allocation5 + $0x48] sm:$0xff]
        %v305 = vld [vmem:[#allocation5 + $0x50] sm:$0xff]
        %v306 = vld [vmem:[#allocation5 + $0x58] sm:$0xff]
        %v307 = vld [vmem:[#allocation5 + $0x60] sm:$0xff]
        %v308 = vld [vmem:[#allocation5 + $0x68] sm:$0xff]
        %v309 = vld [vmem:[#allocation5 + $0x70] sm:$0xff]
        %v310 = vld [vmem:[#allocation5 + $0x78] sm:$0xff]
        %v311 = vld [vmem:[#allocation5 + $0x80] sm:$0xff]
        %v312 = vld [vmem:[#allocation5 + $0x88] sm:$0xff]
        %v313 = vld [vmem:[#allocation5 + $0x90] sm:$0xff]
        %v314 = vld [vmem:[#allocation5 + $0x98] sm:$0xff]
        %v315 = vld [vmem:[#allocation5 + $0xa0] sm:$0xff]
        %v316 = vld [vmem:[#allocation5 + $0xa8] sm:$0xff]
        %v317 = vld [vmem:[#allocation5 + $0xb0] sm:$0xff]
        %v318 = vld [vmem:[#allocation5 + $0xb8] sm:$0xff]
        %v319 = vld [vmem:[#allocation5 + $0xc0] sm:$0xff]
        %v320 = vld [vmem:[#allocation5 + $0xc8] sm:$0xff]
        %v321 = vld [vmem:[#allocation5 + $0xd0] sm:$0xff]
        %v322 = vld [vmem:[#allocation5 + $0xd8] sm:$0xff]
        %v323 = vld [vmem:[#allocation5 + $0xe0] sm:$0xff]
        %v324 = vld [vmem:[#allocation5 + $0xe8] sm:$0xff]
        %v325 = vld [vmem:[#allocation5 + $0xf0] sm:$0xff]
        %v326 = vld [vmem:[#allocation5 + $0xf8] sm:$0xff]
        %v328 = vperm.slane %v270, 0
        %v329 = vperm.slane %v270, 1
        %v364 = vunpack.c.l.b16 %v295
        %v365 = vunpack.c.h.b16 %v295
        %v366 = vunpack.c.l.b16 %v296
        %v367 = vunpack.c.h.b16 %v296
        %v368 = vunpack.c.l.b16 %v297
        %v369 = vunpack.c.h.b16 %v297
        %v370 = vunpack.c.l.b16 %v298
        %v371 = vunpack.c.h.b16 %v298
        %v372 = vunpack.c.l.b16 %v299
        %v373 = vunpack.c.h.b16 %v299
        %v374 = vunpack.c.l.b16 %v300
        %v375 = vunpack.c.h.b16 %v300
        %v376 = vunpack.c.l.b16 %v301
        %v377 = vunpack.c.h.b16 %v301
        %v378 = vunpack.c.l.b16 %v302
        %v379 = vunpack.c.h.b16 %v302
        %v380 = vunpack.c.l.b16 %v303
        %v381 = vunpack.c.h.b16 %v303
        %v382 = vunpack.c.l.b16 %v304
        %v383 = vunpack.c.h.b16 %v304
        %v384 = vunpack.c.l.b16 %v305
        %v385 = vunpack.c.h.b16 %v305
        %v386 = vunpack.c.l.b16 %v306
        %v387 = vunpack.c.h.b16 %v306
        %v388 = vunpack.c.l.b16 %v307
        %v389 = vunpack.c.h.b16 %v307
        %v390 = vunpack.c.l.b16 %v308
        %v391 = vunpack.c.h.b16 %v308
        %v392 = vunpack.c.l.b16 %v309
        %v393 = vunpack.c.h.b16 %v309
        %v394 = vunpack.c.l.b16 %v310
        %v395 = vunpack.c.h.b16 %v310
        %v396 = vunpack.c.l.b16 %v311
        %v397 = vunpack.c.h.b16 %v311
        %v398 = vunpack.c.l.b16 %v312
        %v399 = vunpack.c.h.b16 %v312
        %v400 = vunpack.c.l.b16 %v313
        %v401 = vunpack.c.h.b16 %v313
        %v402 = vunpack.c.l.b16 %v314
        %v403 = vunpack.c.h.b16 %v314
        %v404 = vunpack.c.l.b16 %v315
        %v405 = vunpack.c.h.b16 %v315
        %v406 = vunpack.c.l.b16 %v316
        %v407 = vunpack.c.h.b16 %v316
        %v408 = vunpack.c.l.b16 %v317
        %v409 = vunpack.c.h.b16 %v317
        %v410 = vunpack.c.l.b16 %v318
        %v411 = vunpack.c.h.b16 %v318
        %v412 = vunpack.c.l.b16 %v319
        %v413 = vunpack.c.h.b16 %v319
        %v414 = vunpack.c.l.b16 %v320
        %v415 = vunpack.c.h.b16 %v320
        %v416 = vunpack.c.l.b16 %v321
        %v417 = vunpack.c.h.b16 %v321
        %v418 = vunpack.c.l.b16 %v322
        %v419 = vunpack.c.h.b16 %v322
        %v420 = vunpack.c.l.b16 %v323
        %v421 = vunpack.c.h.b16 %v323
        %v422 = vunpack.c.l.b16 %v324
        %v423 = vunpack.c.h.b16 %v324
        %v424 = vunpack.c.l.b16 %v325
        %v425 = vunpack.c.h.b16 %v325
        %v426 = vunpack.c.l.b16 %v326
        %v427 = vunpack.c.h.b16 %v326
        %v428 = vpack.c.b16 %v366, %v364
        %v429 = vpack.c.b16 %v367, %v365
        %v430 = vpack.c.b16 %v370, %v368
        %v431 = vpack.c.b16 %v371, %v369
        %v432 = vpack.c.b16 %v374, %v372
        %v433 = vpack.c.b16 %v375, %v373
        %v434 = vpack.c.b16 %v378, %v376
        %v435 = vpack.c.b16 %v379, %v377
        %v436 = vpack.c.b16 %v382, %v380
        %v437 = vpack.c.b16 %v383, %v381
        %v438 = vpack.c.b16 %v386, %v384
        %v439 = vpack.c.b16 %v387, %v385
        %v440 = vpack.c.b16 %v390, %v388
        %v441 = vpack.c.b16 %v391, %v389
        %v442 = vpack.c.b16 %v394, %v392
        %v443 = vpack.c.b16 %v395, %v393
        %v444 = vpack.c.b16 %v398, %v396
        %v445 = vpack.c.b16 %v399, %v397
        %v446 = vpack.c.b16 %v402, %v400
        %v447 = vpack.c.b16 %v403, %v401
        %v448 = vpack.c.b16 %v406, %v404
        %v449 = vpack.c.b16 %v407, %v405
        %v450 = vpack.c.b16 %v410, %v408
        %v451 = vpack.c.b16 %v411, %v409
        %v452 = vpack.c.b16 %v414, %v412
        %v453 = vpack.c.b16 %v415, %v413
        %v454 = vpack.c.b16 %v418, %v416
        %v455 = vpack.c.b16 %v419, %v417
        %v456 = vpack.c.b16 %v422, %v420
        %v457 = vpack.c.b16 %v423, %v421
        %v458 = vpack.c.b16 %v426, %v424
        %v459 = vpack.c.b16 %v427, %v425
        %492 = vmatpush.bf16.msra.mxu0 %v442
        %493 = vmatpush.bf16.msra.mxu0 %v440
        %494 = vmatpush.bf16.msra.mxu0 %v438
        %495 = vmatpush.bf16.msra.mxu0 %v436
        %496 = vmatpush.bf16.msra.mxu0 %v434
        %497 = vmatpush.bf16.msra.mxu0 %v432
        %498 = vmatpush.bf16.msra.mxu0 %v430
        %499 = vmatpush.bf16.msra.mxu0 %v428
        %500 = vmatmul.bf16.gmra.mxu0 %v287
        %v501 = vpop.f32.mrf.mxu0
        %v502 = vadd.f32 %v328, %v501
        %v503 = vpop.f32.mrf.mxu0
        %v504 = vadd.f32 %v328, %v503
        %505 = vmatmul.bf16.gmra.mxu0 %v289
        %v506 = vpop.f32.mrf.mxu0
        %v507 = vadd.f32 %v328, %v506
        %v508 = vpop.f32.mrf.mxu0
        %v509 = vadd.f32 %v328, %v508
        %510 = vmatmul.bf16.gmra.mxu0 %v291
        %v511 = vpop.f32.mrf.mxu0
        %v512 = vadd.f32 %v328, %v511
        %v513 = vpop.f32.mrf.mxu0
        %v514 = vadd.f32 %v328, %v513
        %515 = vmatmul.bf16.gmra.mxu0 %v293
        %v516 = vpop.f32.mrf.mxu0
        %v517 = vadd.f32 %v328, %v516
        %v518 = vpop.f32.mrf.mxu0
        %v519 = vadd.f32 %v328, %v518
        %520 = vdwg.mxu0
        %521 = vmatpush.bf16.msra.mxu0 %v458
        %522 = vmatpush.bf16.msra.mxu0 %v456
        %523 = vmatpush.bf16.msra.mxu0 %v454
        %524 = vmatpush.bf16.msra.mxu0 %v452
        %525 = vmatpush.bf16.msra.mxu0 %v450
        %526 = vmatpush.bf16.msra.mxu0 %v448
        %527 = vmatpush.bf16.msra.mxu0 %v446
        %528 = vmatpush.bf16.msra.mxu0 %v444
        %529 = vmatmul.bf16.gmra.mxu0 %v288
        %v530 = vpop.f32.mrf.mxu0
        %v531 = vadd.f32 %v502, %v530
        %v532 = vpop.f32.mrf.mxu0
        %v533 = vadd.f32 %v504, %v532
        %534 = vmatmul.bf16.gmra.mxu0 %v290
        %v535 = vpop.f32.mrf.mxu0
        %v536 = vadd.f32 %v507, %v535
        %v537 = vpop.f32.mrf.mxu0
        %v538 = vadd.f32 %v509, %v537
        %539 = vmatmul.bf16.gmra.mxu0 %v292
        %v540 = vpop.f32.mrf.mxu0
        %v541 = vadd.f32 %v512, %v540
        %v542 = vpop.f32.mrf.mxu0
        %v543 = vadd.f32 %v514, %v542
        %544 = vmatmul.bf16.gmra.mxu0 %v294
        %v545 = vpop.f32.mrf.mxu0
        %v546 = vadd.f32 %v517, %v545
        %v547 = vpop.f32.mrf.mxu0
        %v548 = vadd.f32 %v519, %v547
        %549 = vdwg.mxu0
        %550 = vmatpush.bf16.msra.mxu0 %v443
        %551 = vmatpush.bf16.msra.mxu0 %v441
        %552 = vmatpush.bf16.msra.mxu0 %v439
        %553 = vmatpush.bf16.msra.mxu0 %v437
        %554 = vmatpush.bf16.msra.mxu0 %v435
        %555 = vmatpush.bf16.msra.mxu0 %v433
        %556 = vmatpush.bf16.msra.mxu0 %v431
        %557 = vmatpush.bf16.msra.mxu0 %v429
        %558 = vmatmul.bf16.gmra.mxu0 %v287
        %v559 = vpop.f32.mrf.mxu0
        %v560 = vadd.f32 %v329, %v559
        %v561 = vpop.f32.mrf.mxu0
        %v562 = vadd.f32 %v329, %v561
        %563 = vmatmul.bf16.gmra.mxu0 %v289
        %v564 = vpop.f32.mrf.mxu0
        %v565 = vadd.f32 %v329, %v564
        %v566 = vpop.f32.mrf.mxu0
        %v567 = vadd.f32 %v329, %v566
        %568 = vmatmul.bf16.gmra.mxu0 %v291
        %v569 = vpop.f32.mrf.mxu0
        %v570 = vadd.f32 %v329, %v569
        %v571 = vpop.f32.mrf.mxu0
        %v572 = vadd.f32 %v329, %v571
        %573 = vmatmul.bf16.gmra.mxu0 %v293
        %v574 = vpop.f32.mrf.mxu0
        %v575 = vadd.f32 %v329, %v574
        %v576 = vpop.f32.mrf.mxu0
        %v577 = vadd.f32 %v329, %v576
        %578 = vdwg.mxu0
        %579 = vmatpush.bf16.msra.mxu0 %v459
        %580 = vmatpush.bf16.msra.mxu0 %v457
        %581 = vmatpush.bf16.msra.mxu0 %v455
        %582 = vmatpush.bf16.msra.mxu0 %v453
        %583 = vmatpush.bf16.msra.mxu0 %v451
        %584 = vmatpush.bf16.msra.mxu0 %v449
        %585 = vmatpush.bf16.msra.mxu0 %v447
        %586 = vmatpush.bf16.msra.mxu0 %v445
        %587 = vmatmul.bf16.gmra.mxu0 %v288
        %v588 = vpop.f32.mrf.mxu0
        %v589 = vadd.f32 %v560, %v588
        %v590 = vpop.f32.mrf.mxu0
        %v591 = vadd.f32 %v562, %v590
        %592 = vmatmul.bf16.gmra.mxu0 %v290
        %v593 = vpop.f32.mrf.mxu0
        %v594 = vadd.f32 %v565, %v593
        %v595 = vpop.f32.mrf.mxu0
        %v596 = vadd.f32 %v567, %v595
        %597 = vmatmul.bf16.gmra.mxu0 %v292
        %v598 = vpop.f32.mrf.mxu0
        %v599 = vadd.f32 %v570, %v598
        %v600 = vpop.f32.mrf.mxu0
        %v601 = vadd.f32 %v572, %v600
        %602 = vmatmul.bf16.gmra.mxu0 %v294
        %v603 = vpop.f32.mrf.mxu0
        %v604 = vadd.f32 %v575, %v603
        %v605 = vpop.f32.mrf.mxu0
        %v606 = vadd.f32 %v577, %v605
        %607 = vdwg.mxu0
        %v608 = vmax.f32 %v531, 0.0
        %v609 = vmax.f32 %v589, 0.0
        %v610 = vmax.f32 %v533, 0.0
        %v611 = vmax.f32 %v591, 0.0
        %v612 = vmax.f32 %v536, 0.0
        %v613 = vmax.f32 %v594, 0.0
        %v614 = vmax.f32 %v538, 0.0
        %v615 = vmax.f32 %v596, 0.0
        %v616 = vmax.f32 %v541, 0.0
        %v617 = vmax.f32 %v599, 0.0
        %v618 = vmax.f32 %v543, 0.0
        %v619 = vmax.f32 %v601, 0.0
        %v620 = vmax.f32 %v546, 0.0
        %v621 = vmax.f32 %v604, 0.0
        %v622 = vmax.f32 %v548, 0.0
        %v623 = vmax.f32 %v606, 0.0
        %v624 = vpack.c.bf16 %v610, %v608
        %v625 = vpack.c.bf16 %v611, %v609
        %v626 = vpack.c.bf16 %v614, %v612
        %v627 = vpack.c.bf16 %v615, %v613
        %v628 = vpack.c.bf16 %v618, %v616
        %v629 = vpack.c.bf16 %v619, %v617
        %v630 = vpack.c.bf16 %v622, %v620
        %v631 = vpack.c.bf16 %v623, %v621
        %v632 = vld [vmem:[#allocation7] sm:$0xff]
        %v633 = vld [vmem:[#allocation7 + $0x8] sm:$0xff]
        %v634 = vld [vmem:[#allocation7 + $0x10] sm:$0xff]
        %v635 = vld [vmem:[#allocation7 + $0x18] sm:$0xff]
        %v636 = vld [vmem:[#allocation7 + $0x20] sm:$0xff]
        %v637 = vld [vmem:[#allocation7 + $0x28] sm:$0xff]
        %v638 = vld [vmem:[#allocation7 + $0x30] sm:$0xff]
        %v639 = vld [vmem:[#allocation7 + $0x38] sm:$0xff]
        %v640 = vld [vmem:[#allocation7 + $0x40] sm:$0xff]
        %v641 = vld [vmem:[#allocation7 + $0x48] sm:$0xff]
        %v642 = vld [vmem:[#allocation7 + $0x50] sm:$0xff]
        %v643 = vld [vmem:[#allocation7 + $0x58] sm:$0xff]
        %v644 = vld [vmem:[#allocation7 + $0x60] sm:$0xff]
        %v645 = vld [vmem:[#allocation7 + $0x68] sm:$0xff]
        %v646 = vld [vmem:[#allocation7 + $0x70] sm:$0xff]
        %v647 = vld [vmem:[#allocation7 + $0x78] sm:$0xff]
        %v648 = vld [vmem:[#allocation7 + $0x80] sm:$0xff]
        %v649 = vld [vmem:[#allocation7 + $0x88] sm:$0xff]
        %v650 = vld [vmem:[#allocation7 + $0x90] sm:$0xff]
        %v651 = vld [vmem:[#allocation7 + $0x98] sm:$0xff]
        %v652 = vld [vmem:[#allocation7 + $0xa0] sm:$0xff]
        %v653 = vld [vmem:[#allocation7 + $0xa8] sm:$0xff]
        %v654 = vld [vmem:[#allocation7 + $0xb0] sm:$0xff]
        %v655 = vld [vmem:[#allocation7 + $0xb8] sm:$0xff]
        %v656 = vld [vmem:[#allocation7 + $0xc0] sm:$0xff]
        %v657 = vld [vmem:[#allocation7 + $0xc8] sm:$0xff]
        %v658 = vld [vmem:[#allocation7 + $0xd0] sm:$0xff]
        %v659 = vld [vmem:[#allocation7 + $0xd8] sm:$0xff]
        %v660 = vld [vmem:[#allocation7 + $0xe0] sm:$0xff]
        %v661 = vld [vmem:[#allocation7 + $0xe8] sm:$0xff]
        %v662 = vld [vmem:[#allocation7 + $0xf0] sm:$0xff]
        %v663 = vld [vmem:[#allocation7 + $0xf8] sm:$0xff]
        %v696 = vunpack.c.l.b16 %v632
        %v697 = vunpack.c.h.b16 %v632
        %v698 = vunpack.c.l.b16 %v633
        %v699 = vunpack.c.h.b16 %v633
        %v700 = vunpack.c.l.b16 %v634
        %v701 = vunpack.c.h.b16 %v634
        %v702 = vunpack.c.l.b16 %v635
        %v703 = vunpack.c.h.b16 %v635
        %v704 = vunpack.c.l.b16 %v636
        %v705 = vunpack.c.h.b16 %v636
        %v706 = vunpack.c.l.b16 %v637
        %v707 = vunpack.c.h.b16 %v637
        %v708 = vunpack.c.l.b16 %v638
        %v709 = vunpack.c.h.b16 %v638
        %v710 = vunpack.c.l.b16 %v639
        %v711 = vunpack.c.h.b16 %v639
        %v712 = vunpack.c.l.b16 %v640
        %v713 = vunpack.c.h.b16 %v640
        %v714 = vunpack.c.l.b16 %v641
        %v715 = vunpack.c.h.b16 %v641
        %v716 = vunpack.c.l.b16 %v642
        %v717 = vunpack.c.h.b16 %v642
        %v718 = vunpack.c.l.b16 %v643
        %v719 = vunpack.c.h.b16 %v643
        %v720 = vunpack.c.l.b16 %v644
        %v721 = vunpack.c.h.b16 %v644
        %v722 = vunpack.c.l.b16 %v645
        %v723 = vunpack.c.h.b16 %v645
        %v724 = vunpack.c.l.b16 %v646
        %v725 = vunpack.c.h.b16 %v646
        %v726 = vunpack.c.l.b16 %v647
        %v727 = vunpack.c.h.b16 %v647
        %v728 = vunpack.c.l.b16 %v648
        %v729 = vunpack.c.h.b16 %v648
        %v730 = vunpack.c.l.b16 %v649
        %v731 = vunpack.c.h.b16 %v649
        %v732 = vunpack.c.l.b16 %v650
        %v733 = vunpack.c.h.b16 %v650
        %v734 = vunpack.c.l.b16 %v651
        %v735 = vunpack.c.h.b16 %v651
        %v736 = vunpack.c.l.b16 %v652
        %v737 = vunpack.c.h.b16 %v652
        %v738 = vunpack.c.l.b16 %v653
        %v739 = vunpack.c.h.b16 %v653
        %v740 = vunpack.c.l.b16 %v654
        %v741 = vunpack.c.h.b16 %v654
        %v742 = vunpack.c.l.b16 %v655
        %v743 = vunpack.c.h.b16 %v655
        %v744 = vunpack.c.l.b16 %v656
        %v745 = vunpack.c.h.b16 %v656
        %v746 = vunpack.c.l.b16 %v657
        %v747 = vunpack.c.h.b16 %v657
        %v748 = vunpack.c.l.b16 %v658
        %v749 = vunpack.c.h.b16 %v658
        %v750 = vunpack.c.l.b16 %v659
        %v751 = vunpack.c.h.b16 %v659
        %v752 = vunpack.c.l.b16 %v660
        %v753 = vunpack.c.h.b16 %v660
        %v754 = vunpack.c.l.b16 %v661
        %v755 = vunpack.c.h.b16 %v661
        %v756 = vunpack.c.l.b16 %v662
        %v757 = vunpack.c.h.b16 %v662
        %v758 = vunpack.c.l.b16 %v663
        %v759 = vunpack.c.h.b16 %v663
        %v760 = vpack.c.b16 %v698, %v696
        %v761 = vpack.c.b16 %v699, %v697
        %v762 = vpack.c.b16 %v702, %v700
        %v763 = vpack.c.b16 %v703, %v701
        %v764 = vpack.c.b16 %v706, %v704
        %v765 = vpack.c.b16 %v707, %v705
        %v766 = vpack.c.b16 %v710, %v708
        %v767 = vpack.c.b16 %v711, %v709
        %v768 = vpack.c.b16 %v714, %v712
        %v769 = vpack.c.b16 %v715, %v713
        %v770 = vpack.c.b16 %v718, %v716
        %v771 = vpack.c.b16 %v719, %v717
        %v772 = vpack.c.b16 %v722, %v720
        %v773 = vpack.c.b16 %v723, %v721
        %v774 = vpack.c.b16 %v726, %v724
        %v775 = vpack.c.b16 %v727, %v725
        %v776 = vpack.c.b16 %v730, %v728
        %v777 = vpack.c.b16 %v731, %v729
        %v778 = vpack.c.b16 %v734, %v732
        %v779 = vpack.c.b16 %v735, %v733
        %v780 = vpack.c.b16 %v738, %v736
        %v781 = vpack.c.b16 %v739, %v737
        %v782 = vpack.c.b16 %v742, %v740
        %v783 = vpack.c.b16 %v743, %v741
        %v784 = vpack.c.b16 %v746, %v744
        %v785 = vpack.c.b16 %v747, %v745
        %v786 = vpack.c.b16 %v750, %v748
        %v787 = vpack.c.b16 %v751, %v749
        %v788 = vpack.c.b16 %v754, %v752
        %v789 = vpack.c.b16 %v755, %v753
        %v790 = vpack.c.b16 %v758, %v756
        %v791 = vpack.c.b16 %v759, %v757
        %824 = vmatpush.bf16.msra.mxu0 %v774
        %825 = vmatpush.bf16.msra.mxu0 %v772
        %826 = vmatpush.bf16.msra.mxu0 %v770
        %827 = vmatpush.bf16.msra.mxu0 %v768
        %828 = vmatpush.bf16.msra.mxu0 %v766
        %829 = vmatpush.bf16.msra.mxu0 %v764
        %830 = vmatpush.bf16.msra.mxu0 %v762
        %831 = vmatpush.bf16.msra.mxu0 %v760
        %832 = vmatmul.bf16.gmra.mxu0 %v624
        %v833 = vpop.f32.mrf.mxu0
        %v834 = vadd.f32 %v328, %v833
        %v835 = vpop.f32.mrf.mxu0
        %v836 = vadd.f32 %v328, %v835
        %837 = vmatmul.bf16.gmra.mxu0 %v626
        %v838 = vpop.f32.mrf.mxu0
        %v839 = vadd.f32 %v328, %v838
        %v840 = vpop.f32.mrf.mxu0
        %v841 = vadd.f32 %v328, %v840
        %842 = vmatmul.bf16.gmra.mxu0 %v628
        %v843 = vpop.f32.mrf.mxu0
        %v844 = vadd.f32 %v328, %v843
        %v845 = vpop.f32.mrf.mxu0
        %v846 = vadd.f32 %v328, %v845
        %847 = vmatmul.bf16.gmra.mxu0 %v630
        %v848 = vpop.f32.mrf.mxu0
        %v849 = vadd.f32 %v328, %v848
        %v850 = vpop.f32.mrf.mxu0
        %v851 = vadd.f32 %v328, %v850
        %852 = vdwg.mxu0
        %853 = vmatpush.bf16.msra.mxu0 %v790
        %854 = vmatpush.bf16.msra.mxu0 %v788
        %855 = vmatpush.bf16.msra.mxu0 %v786
        %856 = vmatpush.bf16.msra.mxu0 %v784
        %857 = vmatpush.bf16.msra.mxu0 %v782
        %858 = vmatpush.bf16.msra.mxu0 %v780
        %859 = vmatpush.bf16.msra.mxu0 %v778
        %860 = vmatpush.bf16.msra.mxu0 %v776
        %861 = vmatmul.bf16.gmra.mxu0 %v625
        %v862 = vpop.f32.mrf.mxu0
        %v863 = vadd.f32 %v834, %v862
        %v864 = vpop.f32.mrf.mxu0
        %v865 = vadd.f32 %v836, %v864
        %866 = vmatmul.bf16.gmra.mxu0 %v627
        %v867 = vpop.f32.mrf.mxu0
        %v868 = vadd.f32 %v839, %v867
        %v869 = vpop.f32.mrf.mxu0
        %v870 = vadd.f32 %v841, %v869
        %871 = vmatmul.bf16.gmra.mxu0 %v629
        %v872 = vpop.f32.mrf.mxu0
        %v873 = vadd.f32 %v844, %v872
        %v874 = vpop.f32.mrf.mxu0
        %v875 = vadd.f32 %v846, %v874
        %876 = vmatmul.bf16.gmra.mxu0 %v631
        %v877 = vpop.f32.mrf.mxu0
        %v878 = vadd.f32 %v849, %v877
        %v879 = vpop.f32.mrf.mxu0
        %v880 = vadd.f32 %v851, %v879
        %881 = vdwg.mxu0
        %882 = vmatpush.bf16.msra.mxu0 %v775
        %883 = vmatpush.bf16.msra.mxu0 %v773
        %884 = vmatpush.bf16.msra.mxu0 %v771
        %885 = vmatpush.bf16.msra.mxu0 %v769
        %886 = vmatpush.bf16.msra.mxu0 %v767
        %887 = vmatpush.bf16.msra.mxu0 %v765
        %888 = vmatpush.bf16.msra.mxu0 %v763
        %889 = vmatpush.bf16.msra.mxu0 %v761
        %890 = vmatmul.bf16.gmra.mxu0 %v624
        %v891 = vpop.f32.mrf.mxu0
        %v892 = vadd.f32 %v329, %v891
        %v893 = vpop.f32.mrf.mxu0
        %v894 = vadd.f32 %v329, %v893
        %895 = vmatmul.bf16.gmra.mxu0 %v626
        %v896 = vpop.f32.mrf.mxu0
        %v897 = vadd.f32 %v329, %v896
        %v898 = vpop.f32.mrf.mxu0
        %v899 = vadd.f32 %v329, %v898
        %900 = vmatmul.bf16.gmra.mxu0 %v628
        %v901 = vpop.f32.mrf.mxu0
        %v902 = vadd.f32 %v329, %v901
        %v903 = vpop.f32.mrf.mxu0
        %v904 = vadd.f32 %v329, %v903
        %905 = vmatmul.bf16.gmra.mxu0 %v630
        %v906 = vpop.f32.mrf.mxu0
        %v907 = vadd.f32 %v329, %v906
        %v908 = vpop.f32.mrf.mxu0
        %v909 = vadd.f32 %v329, %v908
        %910 = vdwg.mxu0
        %911 = vmatpush.bf16.msra.mxu0 %v791
        %912 = vmatpush.bf16.msra.mxu0 %v789
        %913 = vmatpush.bf16.msra.mxu0 %v787
        %914 = vmatpush.bf16.msra.mxu0 %v785
        %915 = vmatpush.bf16.msra.mxu0 %v783
        %916 = vmatpush.bf16.msra.mxu0 %v781
        %917 = vmatpush.bf16.msra.mxu0 %v779
        %918 = vmatpush.bf16.msra.mxu0 %v777
        %919 = vmatmul.bf16.gmra.mxu0 %v625
        %v920 = vpop.f32.mrf.mxu0
        %v921 = vadd.f32 %v892, %v920
        %v922 = vpop.f32.mrf.mxu0
        %v923 = vadd.f32 %v894, %v922
        %924 = vmatmul.bf16.gmra.mxu0 %v627
        %v925 = vpop.f32.mrf.mxu0
        %v926 = vadd.f32 %v897, %v925
        %v927 = vpop.f32.mrf.mxu0
        %v928 = vadd.f32 %v899, %v927
        %929 = vmatmul.bf16.gmra.mxu0 %v629
        %v930 = vpop.f32.mrf.mxu0
        %v931 = vadd.f32 %v902, %v930
        %v932 = vpop.f32.mrf.mxu0
        %v933 = vadd.f32 %v904, %v932
        %934 = vmatmul.bf16.gmra.mxu0 %v631
        %v935 = vpop.f32.mrf.mxu0
        %v936 = vadd.f32 %v907, %v935
        %v937 = vpop.f32.mrf.mxu0
        %v938 = vadd.f32 %v909, %v937
        %939 = vdwg.mxu0
        %v940 = vadd.f32 %v254, %v863
        %v941 = vadd.f32 %v255, %v921
        %v942 = vadd.f32 %v256, %v865
        %v943 = vadd.f32 %v257, %v923
        %v944 = vadd.f32 %v258, %v868
        %v945 = vadd.f32 %v259, %v926
        %v946 = vadd.f32 %v260, %v870
        %v947 = vadd.f32 %v261, %v928
        %v948 = vadd.f32 %v262, %v873
        %v949 = vadd.f32 %v263, %v931
        %v950 = vadd.f32 %v264, %v875
        %v951 = vadd.f32 %v265, %v933
        %v952 = vadd.f32 %v266, %v878
        %v953 = vadd.f32 %v267, %v936
        %v954 = vadd.f32 %v268, %v880
        %v955 = vadd.f32 %v269, %v938
        %956 = vst [vmem:[%s251] sm:$0xff] %v940
        %957 = vst [vmem:[%s251 + $0x8] sm:$0xff] %v941
        %958 = vst [vmem:[%s251 + $0x10] sm:$0xff] %v942
        %959 = vst [vmem:[%s251 + $0x18] sm:$0xff] %v943
        %960 = vst [vmem:[%s251 + $0x20] sm:$0xff] %v944
        %961 = vst [vmem:[%s251 + $0x28] sm:$0xff] %v945
        %962 = vst [vmem:[%s251 + $0x30] sm:$0xff] %v946
        %963 = vst [vmem:[%s251 + $0x38] sm:$0xff] %v947
        %964 = vst [vmem:[%s251 + $0x40] sm:$0xff] %v948
        %965 = vst [vmem:[%s251 + $0x48] sm:$0xff] %v949
        %966 = vst [vmem:[%s251 + $0x50] sm:$0xff] %v950
        %967 = vst [vmem:[%s251 + $0x58] sm:$0xff] %v951
        %968 = vst [vmem:[%s251 + $0x60] sm:$0xff] %v952
        %969 = vst [vmem:[%s251 + $0x68] sm:$0xff] %v953
        %970 = vst [vmem:[%s251 + $0x70] sm:$0xff] %v954
        %971 = vst [vmem:[%s251 + $0x78] sm:$0xff] %v955
        %s972 = sand.u32 %s119, 1
        %s973 = scalar_lea.sflag [#allocation4], %s972
        %s974 = sand.u32 %s119, 1
        %s975 = smul.addr %s974, 128
        %s976 = scalar_lea.vmem [#allocation8], %s975
        // Predicated region
        $region49: #{tpu_custom_call.1} parent=35 // pred_check
          %p977 = pneg %p129
        $region50: #{tpu_custom_call.1} parent=35 // pred_check_branch
          %979 = sbr.rel (%p977) target = $region52
        $region51: #{tpu_custom_call.1} parent=35 // pred_region
          %s980 = smul.u32 8, %s22
          %982 = vsyncadd %s973, 0
          %s983 = smul.addr %s980, 2
          %s984 = smul.addr %s983, 8
          %s985 = scalar_lea.hbm %s4, %s984
          %s986 = sshll.u32 %s976, 4
          %s987 = int_to_ptr.vmem [resolvable:$true] %s986
          %s988 = sshll.u32 %s985, 4
          %s989 = int_to_ptr.hbm [resolvable:$true] %s988
          %994 = dma.vmem_to_hbm [thread:$0]  %s987, 2048, %s989, %s973, 256, 256, 16
        $region52: #{tpu_custom_call.1} parent=35 // pred_fallthru
          _
      $region36: #{tpu_custom_call.1} parent=5 // pred_fallthru
        _
      %p995 = scmp.le.s32.totalorder 2, %s17
      // Predicated region
      $region53: #{tpu_custom_call.1} parent=5 // pred_check
        %p996 = pneg %p995
      $region54: #{tpu_custom_call.1} parent=5 // pred_check_branch
        %998 = sbr.rel (%p996) target = $region56
      $region55: #{tpu_custom_call.1} parent=5 // pred_region
        %s999 = ssub.s32 %s17, 2
        // Predicated region
        $region57: #{tpu_custom_call.1} parent=55 // pred_check
          %p1000 = pneg %p135
        $region58: #{tpu_custom_call.1} parent=55 // pred_check_branch
          %1002 = sbr.rel (%p1000) target = $region60
        $region59: #{tpu_custom_call.1} parent=55 // pred_region
          %s1003 = sand.u32 %s120, 1
          %s1004 = scalar_lea.sflag [#allocation4], %s1003
          %s1005 = sand.u32 %s120, 1
          %s1006 = smul.addr %s1005, 128
          %s1007 = scalar_lea.vmem [#allocation8], %s1006
          %1009 = dma.done %s1004, 2048
        $region60: #{tpu_custom_call.1} parent=55 // pred_fallthru
          _
      $region56: #{tpu_custom_call.1} parent=5 // pred_fallthru
        _
    $region6: #{tpu_custom_call.1} parent=1 // loop_footer
      %s21 = sadd.s32 1, %s17
    $region7: #{tpu_custom_call.1} parent=1 // loop_footer_branch
      %16 = sbr.rel target = $region3
    $region8: #{tpu_custom_call.1} parent=1 // loop_exit
      _
    %1010 = vsyncpa [#allocation3], 1
    %s1011 = scalar_lea.sflag [#allocation3], 1
    %1012 = vsyncpa %s1011, 1
    %1013 = vsyncpa [#allocation6], 1
    %1014 = vsyncpa [#allocation4], 1
    %s1015 = scalar_lea.sflag [#allocation4], 1
    %1016 = vsyncpa %s1015, 1

</llo_original>
